<compile_context>
chip_gen: v5e
topology: v5e:2x2
jax: 0.10.0
libtpu: 0.0.40
codegen_flags: <defaults>
</compile_context>

<pallas_src>
import math

import jax
import jax.numpy as jnp
from jax.experimental import pallas as pl
from jax.experimental.pallas import tpu as pltpu


def _round_up(n, m):
    return ((n + m - 1) // m) * m


# ---------------------------------------------------------------------------
# Kernel bodies
# ---------------------------------------------------------------------------
def _residual_single_kernel(x_ref, w_ref, b_ref, o_ref):
    """Fast path: whole (padded) weight is VMEM-resident, single N/K tile.

    x_ref : (TM, D)  original activation dtype, read ONCE (MXU operand via an
                     in-kernel bf16 cast AND the f32 residual branch)
    w_ref : (D, D)   bf16 weight (resident across the row grid)
    b_ref : (1, D)   f32 bias
    o_ref : (TM, D)  output tile (lane-dense)
    """
    x = x_ref[...]
    y = jnp.dot(x.astype(w_ref.dtype), w_ref[...],
                preferred_element_type=jnp.float32)
    # Residual.forward: fn(x) + x  — bias + skip stay in f32.
    y = y + b_ref[...] + x.astype(jnp.float32)
    o_ref[...] = y.astype(o_ref.dtype)


def _residual_ktile_kernel(x_ref, w_ref, b_ref, skip_ref, o_ref, acc_ref):
    """Large-D path: N/K-tiled matmul with a persistent f32 accumulator."""
    k = pl.program_id(2)

    @pl.when(k == 0)
    def _():
        acc_ref[...] = jnp.zeros_like(acc_ref)

    acc_ref[...] += jnp.dot(x_ref[...].astype(w_ref.dtype), w_ref[...],
                            preferred_element_type=jnp.float32)

    @pl.when(k == pl.num_programs(2) - 1)
    def _():
        y = acc_ref[...] + b_ref[...] + skip_ref[...].astype(jnp.float32)
        o_ref[...] = y.astype(o_ref.dtype)


# ---------------------------------------------------------------------------
# Planning helpers
# ---------------------------------------------------------------------------
def _vmem_capacity_bytes():
    try:
        info = pltpu.get_tpu_info()
        cap = int(getattr(info, "vmem_capacity_bytes", 0) or 0)
        if cap > 0:
            return cap
    except Exception:
        pass
    return 64 * 1024 * 1024  # conservative default: v7x per-TensorCore VMEM


def _pick_tm(rows, tm_max):
    """Row-tile size: big enough to amortize per-step overhead, but avoid
    padding a nearly-empty extra tile for awkward row counts."""
    if rows <= tm_max:
        return max(8, _round_up(rows, 16))
    best_tm, best_waste = 256, None
    tm = 256
    while tm <= tm_max:
        waste = _round_up(rows, tm) - rows
        if best_waste is None or waste <= best_waste:
            best_tm, best_waste = tm, waste
        tm += 256
    return best_tm


def prepare_linear_params(w, b, *, compute_dtype=jnp.bfloat16):
    """Pad the Linear(dim, dim) params to a 128-multiple and cast the weight
    to the MXU dtype ONCE, outside the per-call path (no per-call D^2 copy)."""
    D = w.shape[0]
    assert w.shape == (D, D) and b.shape == (D,)
    d_pad = _round_up(D, 128)
    if d_pad != D:
        w = jnp.pad(w, ((0, d_pad - D), (0, d_pad - D)))
        b = jnp.pad(b, (0, d_pad - D))
    return w.astype(compute_dtype), b.astype(jnp.float32).reshape(1, d_pad)


# ---------------------------------------------------------------------------
# pallas_call builders
# ---------------------------------------------------------------------------
def _single_tile_call(x2, w_p, b_p, tm, d_pad, out_dtype, vmem_limit):
    rows_pad = x2.shape[0]

    def build(single_buffer_params):
        kw = {"pipeline_mode": pl.Buffered(1)} if single_buffer_params else {}
        return pl.pallas_call(
            _residual_single_kernel,
            out_shape=jax.ShapeDtypeStruct((rows_pad, d_pad), out_dtype),
            grid_spec=pltpu.PrefetchScalarGridSpec(
                num_scalar_prefetch=0,
                grid=(rows_pad // tm,),
                in_specs=[
                    pl.BlockSpec((tm, d_pad), lambda i: (i, 0)),        # x (once)
                    pl.BlockSpec((d_pad, d_pad), lambda i: (0, 0), **kw),  # W
                    pl.BlockSpec((1, d_pad), lambda i: (0, 0), **kw),       # bias
                ],
                out_specs=pl.BlockSpec((tm, d_pad), lambda i: (i, 0)),
            ),
            compiler_params=pltpu.CompilerParams(
                dimension_semantics=("parallel",),   # row tiles independent
                vmem_limit_bytes=vmem_limit,
            ),
        )

    try:
        # Weight/bias index_map is constant across the row grid, so single
        # buffering them frees d_pad^2 * 2 bytes of VMEM for bigger row tiles.
        return build(True)(x2, w_p, b_p)
    except Exception:
        # Fallback if this runtime rejects pl.Buffered(1).
        return build(False)(x2, w_p, b_p)


def _ktile_call(x2, w_p, b_p, tm, tn, tk, d_pad, out_dtype, vmem_limit):
    rows_pad = x2.shape[0]
    grid = (rows_pad // tm, d_pad // tn, d_pad // tk)
    # NOTE: for very large D a VMEM-resident (d_pad, tn) weight stripe with an
    # inner K loop would avoid re-streaming W once per row tile; not needed at
    # the sizes exercised here.
    return pl.pallas_call(
        _residual_ktile_kernel,
        out_shape=jax.ShapeDtypeStruct((rows_pad, d_pad), out_dtype),
        grid_spec=pltpu.PrefetchScalarGridSpec(
            num_scalar_prefetch=0,
            grid=grid,
            in_specs=[
                pl.BlockSpec((tm, tk), lambda i, j, k: (i, k)),   # x (matmul LHS)
                pl.BlockSpec((tk, tn), lambda i, j, k: (k, j)),   # weight
                pl.BlockSpec((1, tn), lambda i, j, k: (0, j)),    # bias
                pl.BlockSpec((tm, tn), lambda i, j, k: (i, j)),   # residual x
            ],
            out_specs=pl.BlockSpec((tm, tn), lambda i, j, k: (i, j)),
            scratch_shapes=[pltpu.VMEM((tm, tn), jnp.float32)],
        ),
        compiler_params=pltpu.CompilerParams(
            dimension_semantics=("parallel", "parallel", "arbitrary"),
            vmem_limit_bytes=vmem_limit,
        ),
    )(x2, w_p, b_p, x2)   # x passed twice (same HBM buffer): LHS and residual


# ---------------------------------------------------------------------------
# Public wrapper
# ---------------------------------------------------------------------------
def residual_apply(x, w_p, b_p, *, force_ktile_tile=None):
    """out = (x @ W + b) + x  — fused Residual(Linear(dim, dim)) forward.

    x:        (..., D) activations, kept in their original dtype end-to-end.
    w_p, b_p: prepared once via prepare_linear_params (padded, bf16 / f32).
    """
    *lead, D = x.shape
    d_pad = w_p.shape[0]
    assert w_p.shape == (d_pad, d_pad) and b_p.shape == (1, d_pad) and D <= d_pad
    rows = math.prod(lead)
    out_dtype = x.dtype
    x_bytes = x.dtype.itemsize
    w_bytes = w_p.dtype.itemsize
    o_bytes = x_bytes

    # ---- generation-aware VMEM budget & tiling plan -------------------------
    vmem_cap = _vmem_capacity_bytes()
    vmem_limit = max(32 * 2**20, min(int(vmem_cap * 0.75), 110 * 2**20))
    budget = int(vmem_limit * 0.9)           # headroom for compiler scratch
    big_vmem = vmem_cap >= 100 * 2**20       # v5e / v6e: 128 MiB per core
    resident_threshold = 4096 if big_vmem else 2048
    tm_target = 1024 if big_vmem else 512

    tm = _pick_tm(rows, tm_target)
    # Small-VMEM parts are v7x (2 TensorCores/chip): give the parallel row
    # axis at least two tiles when there is enough work so both cores run.
    if (not big_vmem) and rows >= 256 and tm >= rows:
        tm = _round_up((rows + 1) // 2, 16)

    use_single = force_ktile_tile is None and d_pad <= resident_threshold
    if use_single:
        def fits(tm_):
            # conservative: double-buffered x / out, worst-case 2 weight bufs
            return (2 * tm_ * d_pad * (x_bytes + o_bytes)
                    + 2 * d_pad * d_pad * w_bytes
                    + 2 * d_pad * 4) <= budget
        while tm > 256 and not fits(tm):
            tm = max(256, _round_up(tm // 2, 16))
        use_single = fits(tm)

    if not use_single:
        if force_ktile_tile is not None:
            tn = tk = int(force_ktile_tile)
            assert d_pad % tn == 0
        else:
            tn = tk = 128
            for cand in (1024, 512, 256):
                if d_pad % cand == 0:
                    tn = tk = cand
                    break

        def fits_kt(tm_):
            return (2 * tm_ * tk * x_bytes        # x (matmul LHS tiles)
                    + 2 * tk * tn * w_bytes       # weight tiles
                    + 2 * tm_ * tn * x_bytes      # residual tiles
                    + 2 * tm_ * tn * o_bytes      # output tiles
                    + tm_ * tn * 4                # f32 accumulator scratch
                    + 2 * tn * 4) <= budget
        while tm > 256 and not fits_kt(tm):
            tm = max(256, _round_up(tm // 2, 16))

    rows_pad = _round_up(rows, tm)

    # ---- pad ONLY when the shape is actually misaligned ---------------------
    x2 = x.reshape(rows, D)
    padded = rows_pad != rows or d_pad != D
    if padded:
        x2 = jnp.pad(x2, ((0, rows_pad - rows), (0, d_pad - D)))

    if use_single:
        out = _single_tile_call(x2, w_p, b_p, tm, d_pad, out_dtype, vmem_limit)
    else:
        out = _ktile_call(x2, w_p, b_p, tm, tn, tk, d_pad, out_dtype, vmem_limit)

    if padded:
        out = out[:rows, :D]
    return out.reshape(*lead, D)


# ---------------------------------------------------------------------------
if __name__ == "__main__":
    key = jax.random.PRNGKey(0)
    kx, kw, kb = jax.random.split(key, 3)

    # fn = Linear(D, D) wrapped by Residual; small deterministic shapes.
    B, S, D = 2, 8, 256
    x = jax.random.normal(kx, (B, S, D), dtype=jnp.float32)
    w = jax.random.normal(kw, (D, D), dtype=jnp.float32) * 0.02
    b = jax.random.normal(kb, (D,), dtype=jnp.float32) * 0.02

    # One-time parameter prep (pad + bf16 cast), outside the per-call path.
    w_p, b_p = prepare_linear_params(w, b)

    out = jax.block_until_ready(residual_apply(x, w_p, b_p))
    ref = jnp.einsum("bsd,de->bse", x, w) + b + x
    assert out.shape == x.shape and out.dtype == x.dtype
    assert jnp.allclose(out, ref, atol=3e-2, rtol=3e-2), float(
        jnp.max(jnp.abs(out - ref)))

    # Exercise the K-tiled accumulator path at small scale (tn=tk=128).
    out_kt = jax.block_until_ready(
        residual_apply(x, w_p, b_p, force_ktile_tile=128))
    assert jnp.allclose(out_kt, ref, atol=3e-2, rtol=3e-2), float(
        jnp.max(jnp.abs(out_kt - ref)))

    # Misaligned rows / hidden dim: exercises the guarded padding path.
    B2, S2, D2 = 2, 5, 200
    x_m = jax.random.normal(kx, (B2, S2, D2), dtype=jnp.float32)
    w_m = jax.random.normal(kw, (D2, D2), dtype=jnp.float32) * 0.02
    b_m = jax.random.normal(kb, (D2,), dtype=jnp.float32) * 0.02
    w_mp, b_mp = prepare_linear_params(w_m, b_m)
    out_m = jax.block_until_ready(residual_apply(x_m, w_mp, b_mp))
    ref_m = jnp.einsum("bsd,de->bse", x_m, w_m) + b_m + x_m
    assert jnp.allclose(out_m, ref_m, atol=3e-2, rtol=3e-2), float(
        jnp.max(jnp.abs(out_m - ref_m)))

    print("KERNEL_OK")
</pallas_src>

<mosaic_0001>
module attributes {stable_mosaic.version = 11 : i64} {
  func.func @_residual_single_kernel(%arg0: i32, %arg1: memref<16x256xf32, #tpu.memory_space<vmem>>, %arg2: memref<256x256xbf16, #tpu.memory_space<vmem>>, %arg3: memref<1x256xf32, #tpu.memory_space<vmem>>, %arg4: memref<16x256xf32, #tpu.memory_space<vmem>>) attributes {dimension_semantics = [#tpu.dimension_semantics<parallel>], iteration_bounds = array<i64: 1>, scalar_prefetch = 0 : i64, scratch_operands = 0 : i64, tpu.core_type = #tpu.core_type<tc>, window_params = [{transform_indices = @transform_0, window_bounds = array<i64: 16, 256>}, {pipeline_mode = #tpu.pipeline_mode<synchronous>, transform_indices = @transform_1, window_bounds = array<i64: 256, 256>}, {pipeline_mode = #tpu.pipeline_mode<synchronous>, transform_indices = @transform_2, window_bounds = array<i64: 1, 256>}, {transform_indices = @transform_3, window_bounds = array<i64: 16, 256>}]} {
    %c0 = arith.constant 0 : index
    %c0_0 = arith.constant 0 : index
    %0 = vector.load %arg1[%c0, %c0_0] : memref<16x256xf32, #tpu.memory_space<vmem>>, vector<16x256xf32>
    %1 = arith.truncf %0 : vector<16x256xf32> to vector<16x256xbf16>
    %c0_1 = arith.constant 0 : index
    %c0_2 = arith.constant 0 : index
    %2 = vector.load %arg2[%c0_1, %c0_2] : memref<256x256xbf16, #tpu.memory_space<vmem>>, vector<256x256xbf16>
    %cst = arith.constant dense<0.000000e+00> : vector<16x256xf32>
    %3 = tpu.matmul %1, %2, %cst {dimension_numbers = #tpu.dot_dimension_numbers<[1], [0], [0], [1], [0, 0, 1, 1], [], []>} : vector<16x256xbf16>, vector<256x256xbf16>, vector<16x256xf32> -> vector<16x256xf32>
    %c0_3 = arith.constant 0 : index
    %c0_4 = arith.constant 0 : index
    %4 = vector.load %arg3[%c0_3, %c0_4] : memref<1x256xf32, #tpu.memory_space<vmem>>, vector<1x256xf32>
    %5 = vector.broadcast %4 : vector<1x256xf32> to vector<16x256xf32>
    %6 = arith.addf %3, %5 : vector<16x256xf32>
    %7 = arith.addf %6, %0 : vector<16x256xf32>
    %c0_5 = arith.constant 0 : index
    %c0_6 = arith.constant 0 : index
    %8 = vector.load %arg4[%c0_5, %c0_6] : memref<16x256xf32, #tpu.memory_space<vmem>>, vector<16x256xf32>
    tpu.vector_store %arg4[%c0_5, %c0_6], %7 {strides = array<i32>} : memref<16x256xf32, #tpu.memory_space<vmem>>, vector<16x256xf32>,
    return
  }
  func.func @transform_0(%arg0: i32) -> (i32, i32) {
    %c0_i32 = arith.constant 0 : i32
    %c0_i32_0 = arith.constant 0 : i32
    return %arg0, %c0_i32 : i32, i32
  }
  func.func @transform_1(%arg0: i32) -> (i32, i32) {
    %c0_i32 = arith.constant 0 : i32
    %c0_i32_0 = arith.constant 0 : i32
    %c0_i32_1 = arith.constant 0 : i32
    return %c0_i32, %c0_i32_0 : i32, i32
  }
  func.func @transform_2(%arg0: i32) -> (i32, i32) {
    %c0_i32 = arith.constant 0 : i32
    %c0_i32_0 = arith.constant 0 : i32
    %c0_i32_1 = arith.constant 0 : i32
    return %c0_i32, %c0_i32_0 : i32, i32
  }
  func.func @transform_3(%arg0: i32) -> (i32, i32) {
    %c0_i32 = arith.constant 0 : i32
    %c0_i32_0 = arith.constant 0 : i32
    return %arg0, %c0_i32 : i32, i32
  }
}

module attributes {stable_mosaic.version = 11 : i64} {
  func.func @_residual_single_kernel(%arg0: i32, %arg1: memref<16x256xf32, #tpu.memory_space<vmem>>, %arg2: memref<256x256xbf16, #tpu.memory_space<vmem>>, %arg3: memref<1x256xf32, #tpu.memory_space<vmem>>, %arg4: memref<16x256xf32, #tpu.memory_space<vmem>>) attributes {dimension_semantics = [#tpu.dimension_semantics<parallel>], iteration_bounds = array<i64: 1>, scalar_prefetch = 0 : i64, scratch_operands = 0 : i64, tpu.core_type = #tpu.core_type<tc>, window_params = [{transform_indices = @transform_0, window_bounds = array<i64: 16, 256>}, {pipeline_mode = #tpu.pipeline_mode<synchronous>, transform_indices = @transform_1, window_bounds = array<i64: 256, 256>}, {pipeline_mode = #tpu.pipeline_mode<synchronous>, transform_indices = @transform_2, window_bounds = array<i64: 1, 256>}, {transform_indices = @transform_3, window_bounds = array<i64: 16, 256>}]} {
    %c0 = arith.constant 0 : index
    %c0_0 = arith.constant 0 : index
    %0 = vector.load %arg1[%c0, %c0_0] : memref<16x256xf32, #tpu.memory_space<vmem>>, vector<16x256xf32>
    %1 = arith.truncf %0 : vector<16x256xf32> to vector<16x256xbf16>
    %c0_1 = arith.constant 0 : index
    %c0_2 = arith.constant 0 : index
    %2 = vector.load %arg2[%c0_1, %c0_2] : memref<256x256xbf16, #tpu.memory_space<vmem>>, vector<256x256xbf16>
    %cst = arith.constant dense<0.000000e+00> : vector<16x256xf32>
    %3 = tpu.matmul %1, %2, %cst {dimension_numbers = #tpu.dot_dimension_numbers<[1], [0], [0], [1], [0, 0, 1, 1], [], []>} : vector<16x256xbf16>, vector<256x256xbf16>, vector<16x256xf32> -> vector<16x256xf32>
    %c0_3 = arith.constant 0 : index
    %c0_4 = arith.constant 0 : index
    %4 = vector.load %arg3[%c0_3, %c0_4] : memref<1x256xf32, #tpu.memory_space<vmem>>, vector<1x256xf32>
    %5 = vector.broadcast %4 : vector<1x256xf32> to vector<16x256xf32>
    %6 = arith.addf %3, %5 : vector<16x256xf32>
    %7 = arith.addf %6, %0 : vector<16x256xf32>
    %c0_5 = arith.constant 0 : index
    %c0_6 = arith.constant 0 : index
    %8 = vector.load %arg4[%c0_5, %c0_6] : memref<16x256xf32, #tpu.memory_space<vmem>>, vector<16x256xf32>
    tpu.vector_store %arg4[%c0_5, %c0_6], %7 {strides = array<i32>} : memref<16x256xf32, #tpu.memory_space<vmem>>, vector<16x256xf32>,
    return
  }
  func.func @transform_0(%arg0: i32) -> (i32, i32) {
    %c0_i32 = arith.constant 0 : i32
    %c0_i32_0 = arith.constant 0 : i32
    return %arg0, %c0_i32 : i32, i32
  }
  func.func @transform_1(%arg0: i32) -> (i32, i32) {
    %c0_i32 = arith.constant 0 : i32
    %c0_i32_0 = arith.constant 0 : i32
    %c0_i32_1 = arith.constant 0 : i32
    return %c0_i32, %c0_i32_0 : i32, i32
  }
  func.func @transform_2(%arg0: i32) -> (i32, i32) {
    %c0_i32 = arith.constant 0 : i32
    %c0_i32_0 = arith.constant 0 : i32
    %c0_i32_1 = arith.constant 0 : i32
    return %c0_i32, %c0_i32_0 : i32, i32
  }
  func.func @transform_3(%arg0: i32) -> (i32, i32) {
    %c0_i32 = arith.constant 0 : i32
    %c0_i32_0 = arith.constant 0 : i32
    return %arg0, %c0_i32 : i32, i32
  }
}

</mosaic_0001>

<llo_original>
// kernel: tpu_custom_call.1
$region0: #{tpu_custom_call.1}
  #allocation0 [shape = 'u32[]', space=smem, size = 0x4, offset = 0x4, fixed_abs, tag = 'smem constant byte address 0x4 - core index']
  #allocation1 [shape = 'u32[72,128]{1,0:T(1,128)}', space=vmem, size = 0x9000, scoped, tag = 'internal scratch']
  %s0 = inlined_call_operand.hbm [shape: f32[16,256], index: 0, kind: input, shape index: {}]
  %s1 = inlined_call_operand.hbm [shape: bf16[256,256], index: 1, kind: input, shape index: {}]
  %s2 = inlined_call_operand.hbm [shape: f32[1,256], index: 2, kind: input, shape index: {}]
  %s3 = inlined_call_operand.hbm [shape: f32[16,256], index: 3, kind: output, shape index: {}]
  %s4 = sld [smem:[#allocation0]]
  $region34: #{tpu_custom_call.1} parent=0
    _
  %s6 = ssub.s32 1, %s4
  %s7 = scalar_select 0, %s6, %s4
  $region1: #{tpu_custom_call.1} parent=0
    #allocation2 [shape = 'u8[16384]{0}', space=vmem, size = 0x4000, scoped, tag = 'input window, operand 0, single buffered']
    #allocation3 [shape = 's32[1]{0}', space=sflag, size = 0x4, scoped, tag = 'scoped memory for tpu_custom_call.1']
    #allocation4 [shape = 's32[1]{0}', space=sflag, size = 0x4, scoped, tag = 'scoped memory for tpu_custom_call.1']
    #allocation5 [shape = 'u8[131072]{0}', space=vmem, size = 0x20000, scoped, tag = 'input window, operand 1, single buffered']
    #allocation6 [shape = 's32[1]{0}', space=sflag, size = 0x4, scoped, tag = 'scoped memory for tpu_custom_call.1']
    #allocation7 [shape = 'u8[1024]{0}', space=vmem, size = 0x400, scoped, tag = 'input window, operand 2, single buffered']
    #allocation8 [shape = 'u8[16384]{0}', space=vmem, size = 0x4000, scoped, tag = 'output window, operand 0, single buffered']
    %8 = vsyncpa [#allocation3], 0
    %9 = vsyncpa [#allocation6], 0
    %10 = vsyncpa [#allocation4], 0
    // Predicated region
    $region2: #{tpu_custom_call.1} parent=1 // pred_check
      _
    $region3: #{tpu_custom_call.1} parent=1 // pred_check_branch
      %12 = sbr.rel (0) target = $region5
    $region4: #{tpu_custom_call.1} parent=1 // pred_region
      %14 = vsyncadd [#allocation3], 0
      %s15 = sshll.u32 %s0, 4
      %s16 = int_to_ptr.hbm [resolvable:$true] %s15
      %s17 = sshll.u32 [#allocation2], 4
      %s18 = int_to_ptr.vmem [resolvable:$true] %s17
      %23 = dma.hbm_to_vmem [thread:$0]  %s16, 512, %s18, [#allocation3], 256, 256, 16
    $region5: #{tpu_custom_call.1} parent=1 // pred_fallthru
      _
    // Predicated region
    $region6: #{tpu_custom_call.1} parent=1 // pred_check
      _
    $region7: #{tpu_custom_call.1} parent=1 // pred_check_branch
      %25 = sbr.rel (0) target = $region9
    $region8: #{tpu_custom_call.1} parent=1 // pred_region
      %27 = vsyncadd [#allocation6], 0
      %s28 = sshll.u32 %s1, 4
      %s29 = int_to_ptr.hbm [resolvable:$true] %s28
      %s30 = sshll.u32 [#allocation5], 4
      %s31 = int_to_ptr.vmem [resolvable:$true] %s30
      %36 = dma.hbm_to_vmem [thread:$0]  %s29, 4096, %s31, [#allocation6], 128, 128, 8
    $region9: #{tpu_custom_call.1} parent=1 // pred_fallthru
      _
    // Predicated region
    $region10: #{tpu_custom_call.1} parent=1 // pred_check
      _
    $region11: #{tpu_custom_call.1} parent=1 // pred_check_branch
      %38 = sbr.rel (0) target = $region13
    $region12: #{tpu_custom_call.1} parent=1 // pred_region
      %40 = vsyncadd [#allocation6], 0
      %s42 = sshll.u32 %s2, 4
      %s43 = int_to_ptr.hbm [resolvable:$true] %s42
      %s44 = sshll.u32 [#allocation7], 4
      %s45 = int_to_ptr.vmem [resolvable:$true] %s44
      %47 = dma.hbm_to_vmem [thread:$0]  %s43, 32, %s45, [#allocation6]
    $region13: #{tpu_custom_call.1} parent=1 // pred_fallthru
      _
    // Predicated region
    $region14: #{tpu_custom_call.1} parent=1 // pred_check
      _
    $region15: #{tpu_custom_call.1} parent=1 // pred_check_branch
      %49 = sbr.rel (0) target = $region17
    $region16: #{tpu_custom_call.1} parent=1 // pred_region
      %51 = dma.done [#allocation3], 512
    $region17: #{tpu_custom_call.1} parent=1 // pred_fallthru
      _
    // Predicated region
    $region18: #{tpu_custom_call.1} parent=1 // pred_check
      _
    $region19: #{tpu_custom_call.1} parent=1 // pred_check_branch
      %53 = sbr.rel (0) target = $region21
    $region20: #{tpu_custom_call.1} parent=1 // pred_region
      %55 = dma.done [#allocation6], 4096
    $region21: #{tpu_custom_call.1} parent=1 // pred_fallthru
      _
    // Predicated region
    $region22: #{tpu_custom_call.1} parent=1 // pred_check
      _
    $region23: #{tpu_custom_call.1} parent=1 // pred_check_branch
      %57 = sbr.rel (0) target = $region25
    $region24: #{tpu_custom_call.1} parent=1 // pred_region
      %59 = dma.done [#allocation6], 32
    $region25: #{tpu_custom_call.1} parent=1 // pred_fallthru
      _
    %v60 = vld [vmem:[#allocation2] sm:$0xff]
    %v61 = vld [vmem:[#allocation2 + $0x8] sm:$0xff]
    %v62 = vld [vmem:[#allocation2 + $0x10] sm:$0xff]
    %v63 = vld [vmem:[#allocation2 + $0x18] sm:$0xff]
    %v64 = vpack.c.bf16 %v62, %v60
    %v65 = vpack.c.bf16 %v63, %v61
    %v66 = vld [vmem:[#allocation5] sm:$0xff]
    %v67 = vld [vmem:[#allocation5 + $0x8] sm:$0xff]
    %v68 = vld [vmem:[#allocation5 + $0x10] sm:$0xff]
    %v69 = vld [vmem:[#allocation5 + $0x18] sm:$0xff]
    %v70 = vld [vmem:[#allocation5 + $0x20] sm:$0xff]
    %v71 = vld [vmem:[#allocation5 + $0x28] sm:$0xff]
    %v72 = vld [vmem:[#allocation5 + $0x30] sm:$0xff]
    %v73 = vld [vmem:[#allocation5 + $0x38] sm:$0xff]
    %v74 = vld [vmem:[#allocation5 + $0x40] sm:$0xff]
    %v75 = vld [vmem:[#allocation5 + $0x48] sm:$0xff]
    %v76 = vld [vmem:[#allocation5 + $0x50] sm:$0xff]
    %v77 = vld [vmem:[#allocation5 + $0x58] sm:$0xff]
    %v78 = vld [vmem:[#allocation5 + $0x60] sm:$0xff]
    %v79 = vld [vmem:[#allocation5 + $0x68] sm:$0xff]
    %v80 = vld [vmem:[#allocation5 + $0x70] sm:$0xff]
    %v81 = vld [vmem:[#allocation5 + $0x78] sm:$0xff]
    %v82 = vld [vmem:[#allocation5 + $0x80] sm:$0xff]
    %v83 = vld [vmem:[#allocation5 + $0x88] sm:$0xff]
    %v84 = vld [vmem:[#allocation5 + $0x90] sm:$0xff]
    %v85 = vld [vmem:[#allocation5 + $0x98] sm:$0xff]
    %v86 = vld [vmem:[#allocation5 + $0xa0] sm:$0xff]
    %v87 = vld [vmem:[#allocation5 + $0xa8] sm:$0xff]
    %v88 = vld [vmem:[#allocation5 + $0xb0] sm:$0xff]
    %v89 = vld [vmem:[#allocation5 + $0xb8] sm:$0xff]
    %v90 = vld [vmem:[#allocation5 + $0xc0] sm:$0xff]
    %v91 = vld [vmem:[#allocation5 + $0xc8] sm:$0xff]
    %v92 = vld [vmem:[#allocation5 + $0xd0] sm:$0xff]
    %v93 = vld [vmem:[#allocation5 + $0xd8] sm:$0xff]
    %v94 = vld [vmem:[#allocation5 + $0xe0] sm:$0xff]
    %v95 = vld [vmem:[#allocation5 + $0xe8] sm:$0xff]
    %v96 = vld [vmem:[#allocation5 + $0xf0] sm:$0xff]
    %v97 = vld [vmem:[#allocation5 + $0xf8] sm:$0xff]
    %v98 = vld [vmem:[#allocation7] sm:$0x3]
    %v100 = vperm.slane %v98, 0
    %v101 = vperm.slane %v98, 1
    %v136 = vunpack.c.l.b16 %v66
    %v137 = vunpack.c.h.b16 %v66
    %v138 = vunpack.c.l.b16 %v67
    %v139 = vunpack.c.h.b16 %v67
    %v140 = vunpack.c.l.b16 %v68
    %v141 = vunpack.c.h.b16 %v68
    %v142 = vunpack.c.l.b16 %v69
    %v143 = vunpack.c.h.b16 %v69
    %v144 = vunpack.c.l.b16 %v70
    %v145 = vunpack.c.h.b16 %v70
    %v146 = vunpack.c.l.b16 %v71
    %v147 = vunpack.c.h.b16 %v71
    %v148 = vunpack.c.l.b16 %v72
    %v149 = vunpack.c.h.b16 %v72
    %v150 = vunpack.c.l.b16 %v73
    %v151 = vunpack.c.h.b16 %v73
    %v152 = vunpack.c.l.b16 %v74
    %v153 = vunpack.c.h.b16 %v74
    %v154 = vunpack.c.l.b16 %v75
    %v155 = vunpack.c.h.b16 %v75
    %v156 = vunpack.c.l.b16 %v76
    %v157 = vunpack.c.h.b16 %v76
    %v158 = vunpack.c.l.b16 %v77
    %v159 = vunpack.c.h.b16 %v77
    %v160 = vunpack.c.l.b16 %v78
    %v161 = vunpack.c.h.b16 %v78
    %v162 = vunpack.c.l.b16 %v79
    %v163 = vunpack.c.h.b16 %v79
    %v164 = vunpack.c.l.b16 %v80
    %v165 = vunpack.c.h.b16 %v80
    %v166 = vunpack.c.l.b16 %v81
    %v167 = vunpack.c.h.b16 %v81
    %v168 = vunpack.c.l.b16 %v82
    %v169 = vunpack.c.h.b16 %v82
    %v170 = vunpack.c.l.b16 %v83
    %v171 = vunpack.c.h.b16 %v83
    %v172 = vunpack.c.l.b16 %v84
    %v173 = vunpack.c.h.b16 %v84
    %v174 = vunpack.c.l.b16 %v85
    %v175 = vunpack.c.h.b16 %v85
    %v176 = vunpack.c.l.b16 %v86
    %v177 = vunpack.c.h.b16 %v86
    %v178 = vunpack.c.l.b16 %v87
    %v179 = vunpack.c.h.b16 %v87
    %v180 = vunpack.c.l.b16 %v88
    %v181 = vunpack.c.h.b16 %v88
    %v182 = vunpack.c.l.b16 %v89
    %v183 = vunpack.c.h.b16 %v89
    %v184 = vunpack.c.l.b16 %v90
    %v185 = vunpack.c.h.b16 %v90
    %v186 = vunpack.c.l.b16 %v91
    %v187 = vunpack.c.h.b16 %v91
    %v188 = vunpack.c.l.b16 %v92
    %v189 = vunpack.c.h.b16 %v92
    %v190 = vunpack.c.l.b16 %v93
    %v191 = vunpack.c.h.b16 %v93
    %v192 = vunpack.c.l.b16 %v94
    %v193 = vunpack.c.h.b16 %v94
    %v194 = vunpack.c.l.b16 %v95
    %v195 = vunpack.c.h.b16 %v95
    %v196 = vunpack.c.l.b16 %v96
    %v197 = vunpack.c.h.b16 %v96
    %v198 = vunpack.c.l.b16 %v97
    %v199 = vunpack.c.h.b16 %v97
    %v200 = vpack.c.b16 %v138, %v136
    %v201 = vpack.c.b16 %v139, %v137
    %v202 = vpack.c.b16 %v142, %v140
    %v203 = vpack.c.b16 %v143, %v141
    %v204 = vpack.c.b16 %v146, %v144
    %v205 = vpack.c.b16 %v147, %v145
    %v206 = vpack.c.b16 %v150, %v148
    %v207 = vpack.c.b16 %v151, %v149
    %v208 = vpack.c.b16 %v154, %v152
    %v209 = vpack.c.b16 %v155, %v153
    %v210 = vpack.c.b16 %v158, %v156
    %v211 = vpack.c.b16 %v159, %v157
    %v212 = vpack.c.b16 %v162, %v160
    %v213 = vpack.c.b16 %v163, %v161
    %v214 = vpack.c.b16 %v166, %v164
    %v215 = vpack.c.b16 %v167, %v165
    %v216 = vpack.c.b16 %v170, %v168
    %v217 = vpack.c.b16 %v171, %v169
    %v218 = vpack.c.b16 %v174, %v172
    %v219 = vpack.c.b16 %v175, %v173
    %v220 = vpack.c.b16 %v178, %v176
    %v221 = vpack.c.b16 %v179, %v177
    %v222 = vpack.c.b16 %v182, %v180
    %v223 = vpack.c.b16 %v183, %v181
    %v224 = vpack.c.b16 %v186, %v184
    %v225 = vpack.c.b16 %v187, %v185
    %v226 = vpack.c.b16 %v190, %v188
    %v227 = vpack.c.b16 %v191, %v189
    %v228 = vpack.c.b16 %v194, %v192
    %v229 = vpack.c.b16 %v195, %v193
    %v230 = vpack.c.b16 %v198, %v196
    %v231 = vpack.c.b16 %v199, %v197
    %264 = vmatpush.bf16.msra.mxu0 %v214
    %265 = vmatpush.bf16.msra.mxu0 %v212
    %266 = vmatpush.bf16.msra.mxu0 %v210
    %267 = vmatpush.bf16.msra.mxu0 %v208
    %268 = vmatpush.bf16.msra.mxu0 %v206
    %269 = vmatpush.bf16.msra.mxu0 %v204
    %270 = vmatpush.bf16.msra.mxu0 %v202
    %271 = vmatpush.bf16.msra.mxu0 %v200
    %272 = vmatmul.bf16.gmra.mxu0 %v64
    %v273 = vpop.f32.mrf.mxu0
    %v274 = vadd.f32 %v100, %v273
    %v275 = vpop.f32.mrf.mxu0
    %v276 = vadd.f32 %v100, %v275
    %277 = vdwg.mxu0
    %278 = vmatpush.bf16.msra.mxu0 %v230
    %279 = vmatpush.bf16.msra.mxu0 %v228
    %280 = vmatpush.bf16.msra.mxu0 %v226
    %281 = vmatpush.bf16.msra.mxu0 %v224
    %282 = vmatpush.bf16.msra.mxu0 %v222
    %283 = vmatpush.bf16.msra.mxu0 %v220
    %284 = vmatpush.bf16.msra.mxu0 %v218
    %285 = vmatpush.bf16.msra.mxu0 %v216
    %286 = vmatmul.bf16.gmra.mxu0 %v65
    %v287 = vpop.f32.mrf.mxu0
    %v288 = vadd.f32 %v274, %v287
    %v289 = vpop.f32.mrf.mxu0
    %v290 = vadd.f32 %v276, %v289
    %291 = vdwg.mxu0
    %292 = vmatpush.bf16.msra.mxu0 %v215
    %293 = vmatpush.bf16.msra.mxu0 %v213
    %294 = vmatpush.bf16.msra.mxu0 %v211
    %295 = vmatpush.bf16.msra.mxu0 %v209
    %296 = vmatpush.bf16.msra.mxu0 %v207
    %297 = vmatpush.bf16.msra.mxu0 %v205
    %298 = vmatpush.bf16.msra.mxu0 %v203
    %299 = vmatpush.bf16.msra.mxu0 %v201
    %300 = vmatmul.bf16.gmra.mxu0 %v64
    %v301 = vpop.f32.mrf.mxu0
    %v302 = vadd.f32 %v101, %v301
    %v303 = vpop.f32.mrf.mxu0
    %v304 = vadd.f32 %v101, %v303
    %305 = vdwg.mxu0
    %306 = vmatpush.bf16.msra.mxu0 %v231
    %307 = vmatpush.bf16.msra.mxu0 %v229
    %308 = vmatpush.bf16.msra.mxu0 %v227
    %309 = vmatpush.bf16.msra.mxu0 %v225
    %310 = vmatpush.bf16.msra.mxu0 %v223
    %311 = vmatpush.bf16.msra.mxu0 %v221
    %312 = vmatpush.bf16.msra.mxu0 %v219
    %313 = vmatpush.bf16.msra.mxu0 %v217
    %314 = vmatmul.bf16.gmra.mxu0 %v65
    %v315 = vpop.f32.mrf.mxu0
    %v316 = vadd.f32 %v302, %v315
    %v317 = vpop.f32.mrf.mxu0
    %v318 = vadd.f32 %v304, %v317
    %319 = vdwg.mxu0
    %v320 = vadd.f32 %v288, %v60
    %v321 = vadd.f32 %v316, %v61
    %v322 = vadd.f32 %v290, %v62
    %v323 = vadd.f32 %v318, %v63
    %324 = vst [vmem:[#allocation8] sm:$0xff] %v320
    %325 = vst [vmem:[#allocation8 + $0x8] sm:$0xff] %v321
    %326 = vst [vmem:[#allocation8 + $0x10] sm:$0xff] %v322
    %327 = vst [vmem:[#allocation8 + $0x18] sm:$0xff] %v323
    // Predicated region
    $region26: #{tpu_custom_call.1} parent=1 // pred_check
      _
    $region27: #{tpu_custom_call.1} parent=1 // pred_check_branch
      %329 = sbr.rel (0) target = $region29
    $region28: #{tpu_custom_call.1} parent=1 // pred_region
      %331 = vsyncadd [#allocation4], 0
      %s332 = sshll.u32 [#allocation8], 4
      %s333 = int_to_ptr.vmem [resolvable:$true] %s332
      %s334 = sshll.u32 %s3, 4
      %s335 = int_to_ptr.hbm [resolvable:$true] %s334
      %340 = dma.vmem_to_hbm [thread:$0]  %s333, 512, %s335, [#allocation4], 256, 256, 16
    $region29: #{tpu_custom_call.1} parent=1 // pred_fallthru
      _
    // Predicated region
    $region30: #{tpu_custom_call.1} parent=1 // pred_check
      _
    $region31: #{tpu_custom_call.1} parent=1 // pred_check_branch
      %342 = sbr.rel (0) target = $region33
    $region32: #{tpu_custom_call.1} parent=1 // pred_region
      %344 = dma.done [#allocation4], 512
    $region33: #{tpu_custom_call.1} parent=1 // pred_fallthru
      _
    %345 = vsyncpa [#allocation3], 1
    %346 = vsyncpa [#allocation6], 1
    %347 = vsyncpa [#allocation4], 1

// kernel: tpu_custom_call.1
$region0: #{tpu_custom_call.1}
  #allocation0 [shape = 'u32[]', space=smem, size = 0x4, offset = 0x4, fixed_abs, tag = 'smem constant byte address 0x4 - core index']
  #allocation1 [shape = 'u32[72,128]{1,0:T(1,128)}', space=vmem, size = 0x9000, scoped, tag = 'internal scratch']
  %s0 = inlined_call_operand.hbm [shape: f32[16,256], index: 0, kind: input, shape index: {}]
  %s1 = inlined_call_operand.hbm [shape: bf16[256,256], index: 1, kind: input, shape index: {}]
  %s2 = inlined_call_operand.hbm [shape: f32[1,256], index: 2, kind: input, shape index: {}]
  %s3 = inlined_call_operand.hbm [shape: f32[16,256], index: 3, kind: output, shape index: {}]
  %s4 = sld [smem:[#allocation0]]
  $region34: #{tpu_custom_call.1} parent=0
    _
  %s6 = ssub.s32 1, %s4
  %s7 = scalar_select 0, %s6, %s4
  $region1: #{tpu_custom_call.1} parent=0
    #allocation2 [shape = 'u8[16384]{0}', space=vmem, size = 0x4000, scoped, tag = 'input window, operand 0, single buffered']
    #allocation3 [shape = 's32[1]{0}', space=sflag, size = 0x4, scoped, tag = 'scoped memory for tpu_custom_call.1']
    #allocation4 [shape = 's32[1]{0}', space=sflag, size = 0x4, scoped, tag = 'scoped memory for tpu_custom_call.1']
    #allocation5 [shape = 'u8[131072]{0}', space=vmem, size = 0x20000, scoped, tag = 'input window, operand 1, single buffered']
    #allocation6 [shape = 's32[1]{0}', space=sflag, size = 0x4, scoped, tag = 'scoped memory for tpu_custom_call.1']
    #allocation7 [shape = 'u8[1024]{0}', space=vmem, size = 0x400, scoped, tag = 'input window, operand 2, single buffered']
    #allocation8 [shape = 'u8[16384]{0}', space=vmem, size = 0x4000, scoped, tag = 'output window, operand 0, single buffered']
    %8 = vsyncpa [#allocation3], 0
    %9 = vsyncpa [#allocation6], 0
    %10 = vsyncpa [#allocation4], 0
    // Predicated region
    $region2: #{tpu_custom_call.1} parent=1 // pred_check
      _
    $region3: #{tpu_custom_call.1} parent=1 // pred_check_branch
      %12 = sbr.rel (0) target = $region5
    $region4: #{tpu_custom_call.1} parent=1 // pred_region
      %14 = vsyncadd [#allocation3], 0
      %s15 = sshll.u32 %s0, 4
      %s16 = int_to_ptr.hbm [resolvable:$true] %s15
      %s17 = sshll.u32 [#allocation2], 4
      %s18 = int_to_ptr.vmem [resolvable:$true] %s17
      %23 = dma.hbm_to_vmem [thread:$0]  %s16, 512, %s18, [#allocation3], 256, 256, 16
    $region5: #{tpu_custom_call.1} parent=1 // pred_fallthru
      _
    // Predicated region
    $region6: #{tpu_custom_call.1} parent=1 // pred_check
      _
    $region7: #{tpu_custom_call.1} parent=1 // pred_check_branch
      %25 = sbr.rel (0) target = $region9
    $region8: #{tpu_custom_call.1} parent=1 // pred_region
      %27 = vsyncadd [#allocation6], 0
      %s28 = sshll.u32 %s1, 4
      %s29 = int_to_ptr.hbm [resolvable:$true] %s28
      %s30 = sshll.u32 [#allocation5], 4
      %s31 = int_to_ptr.vmem [resolvable:$true] %s30
      %36 = dma.hbm_to_vmem [thread:$0]  %s29, 4096, %s31, [#allocation6], 128, 128, 8
    $region9: #{tpu_custom_call.1} parent=1 // pred_fallthru
      _
    // Predicated region
    $region10: #{tpu_custom_call.1} parent=1 // pred_check
      _
    $region11: #{tpu_custom_call.1} parent=1 // pred_check_branch
      %38 = sbr.rel (0) target = $region13
    $region12: #{tpu_custom_call.1} parent=1 // pred_region
      %40 = vsyncadd [#allocation6], 0
      %s42 = sshll.u32 %s2, 4
      %s43 = int_to_ptr.hbm [resolvable:$true] %s42
      %s44 = sshll.u32 [#allocation7], 4
      %s45 = int_to_ptr.vmem [resolvable:$true] %s44
      %47 = dma.hbm_to_vmem [thread:$0]  %s43, 32, %s45, [#allocation6]
    $region13: #{tpu_custom_call.1} parent=1 // pred_fallthru
      _
    // Predicated region
    $region14: #{tpu_custom_call.1} parent=1 // pred_check
      _
    $region15: #{tpu_custom_call.1} parent=1 // pred_check_branch
      %49 = sbr.rel (0) target = $region17
    $region16: #{tpu_custom_call.1} parent=1 // pred_region
      %51 = dma.done [#allocation3], 512
    $region17: #{tpu_custom_call.1} parent=1 // pred_fallthru
      _
    // Predicated region
    $region18: #{tpu_custom_call.1} parent=1 // pred_check
      _
    $region19: #{tpu_custom_call.1} parent=1 // pred_check_branch
      %53 = sbr.rel (0) target = $region21
    $region20: #{tpu_custom_call.1} parent=1 // pred_region
      %55 = dma.done [#allocation6], 4096
    $region21: #{tpu_custom_call.1} parent=1 // pred_fallthru
      _
    // Predicated region
    $region22: #{tpu_custom_call.1} parent=1 // pred_check
      _
    $region23: #{tpu_custom_call.1} parent=1 // pred_check_branch
      %57 = sbr.rel (0) target = $region25
    $region24: #{tpu_custom_call.1} parent=1 // pred_region
      %59 = dma.done [#allocation6], 32
    $region25: #{tpu_custom_call.1} parent=1 // pred_fallthru
      _
    %v60 = vld [vmem:[#allocation2] sm:$0xff]
    %v61 = vld [vmem:[#allocation2 + $0x8] sm:$0xff]
    %v62 = vld [vmem:[#allocation2 + $0x10] sm:$0xff]
    %v63 = vld [vmem:[#allocation2 + $0x18] sm:$0xff]
    %v64 = vpack.c.bf16 %v62, %v60
    %v65 = vpack.c.bf16 %v63, %v61
    %v66 = vld [vmem:[#allocation5] sm:$0xff]
    %v67 = vld [vmem:[#allocation5 + $0x8] sm:$0xff]
    %v68 = vld [vmem:[#allocation5 + $0x10] sm:$0xff]
    %v69 = vld [vmem:[#allocation5 + $0x18] sm:$0xff]
    %v70 = vld [vmem:[#allocation5 + $0x20] sm:$0xff]
    %v71 = vld [vmem:[#allocation5 + $0x28] sm:$0xff]
    %v72 = vld [vmem:[#allocation5 + $0x30] sm:$0xff]
    %v73 = vld [vmem:[#allocation5 + $0x38] sm:$0xff]
    %v74 = vld [vmem:[#allocation5 + $0x40] sm:$0xff]
    %v75 = vld [vmem:[#allocation5 + $0x48] sm:$0xff]
    %v76 = vld [vmem:[#allocation5 + $0x50] sm:$0xff]
    %v77 = vld [vmem:[#allocation5 + $0x58] sm:$0xff]
    %v78 = vld [vmem:[#allocation5 + $0x60] sm:$0xff]
    %v79 = vld [vmem:[#allocation5 + $0x68] sm:$0xff]
    %v80 = vld [vmem:[#allocation5 + $0x70] sm:$0xff]
    %v81 = vld [vmem:[#allocation5 + $0x78] sm:$0xff]
    %v82 = vld [vmem:[#allocation5 + $0x80] sm:$0xff]
    %v83 = vld [vmem:[#allocation5 + $0x88] sm:$0xff]
    %v84 = vld [vmem:[#allocation5 + $0x90] sm:$0xff]
    %v85 = vld [vmem:[#allocation5 + $0x98] sm:$0xff]
    %v86 = vld [vmem:[#allocation5 + $0xa0] sm:$0xff]
    %v87 = vld [vmem:[#allocation5 + $0xa8] sm:$0xff]
    %v88 = vld [vmem:[#allocation5 + $0xb0] sm:$0xff]
    %v89 = vld [vmem:[#allocation5 + $0xb8] sm:$0xff]
    %v90 = vld [vmem:[#allocation5 + $0xc0] sm:$0xff]
    %v91 = vld [vmem:[#allocation5 + $0xc8] sm:$0xff]
    %v92 = vld [vmem:[#allocation5 + $0xd0] sm:$0xff]
    %v93 = vld [vmem:[#allocation5 + $0xd8] sm:$0xff]
    %v94 = vld [vmem:[#allocation5 + $0xe0] sm:$0xff]
    %v95 = vld [vmem:[#allocation5 + $0xe8] sm:$0xff]
    %v96 = vld [vmem:[#allocation5 + $0xf0] sm:$0xff]
    %v97 = vld [vmem:[#allocation5 + $0xf8] sm:$0xff]
    %v98 = vld [vmem:[#allocation7] sm:$0x3]
    %v100 = vperm.slane %v98, 0
    %v101 = vperm.slane %v98, 1
    %v136 = vunpack.c.l.b16 %v66
    %v137 = vunpack.c.h.b16 %v66
    %v138 = vunpack.c.l.b16 %v67
    %v139 = vunpack.c.h.b16 %v67
    %v140 = vunpack.c.l.b16 %v68
    %v141 = vunpack.c.h.b16 %v68
    %v142 = vunpack.c.l.b16 %v69
    %v143 = vunpack.c.h.b16 %v69
    %v144 = vunpack.c.l.b16 %v70
    %v145 = vunpack.c.h.b16 %v70
    %v146 = vunpack.c.l.b16 %v71
    %v147 = vunpack.c.h.b16 %v71
    %v148 = vunpack.c.l.b16 %v72
    %v149 = vunpack.c.h.b16 %v72
    %v150 = vunpack.c.l.b16 %v73
    %v151 = vunpack.c.h.b16 %v73
    %v152 = vunpack.c.l.b16 %v74
    %v153 = vunpack.c.h.b16 %v74
    %v154 = vunpack.c.l.b16 %v75
    %v155 = vunpack.c.h.b16 %v75
    %v156 = vunpack.c.l.b16 %v76
    %v157 = vunpack.c.h.b16 %v76
    %v158 = vunpack.c.l.b16 %v77
    %v159 = vunpack.c.h.b16 %v77
    %v160 = vunpack.c.l.b16 %v78
    %v161 = vunpack.c.h.b16 %v78
    %v162 = vunpack.c.l.b16 %v79
    %v163 = vunpack.c.h.b16 %v79
    %v164 = vunpack.c.l.b16 %v80
    %v165 = vunpack.c.h.b16 %v80
    %v166 = vunpack.c.l.b16 %v81
    %v167 = vunpack.c.h.b16 %v81
    %v168 = vunpack.c.l.b16 %v82
    %v169 = vunpack.c.h.b16 %v82
    %v170 = vunpack.c.l.b16 %v83
    %v171 = vunpack.c.h.b16 %v83
    %v172 = vunpack.c.l.b16 %v84
    %v173 = vunpack.c.h.b16 %v84
    %v174 = vunpack.c.l.b16 %v85
    %v175 = vunpack.c.h.b16 %v85
    %v176 = vunpack.c.l.b16 %v86
    %v177 = vunpack.c.h.b16 %v86
    %v178 = vunpack.c.l.b16 %v87
    %v179 = vunpack.c.h.b16 %v87
    %v180 = vunpack.c.l.b16 %v88
    %v181 = vunpack.c.h.b16 %v88
    %v182 = vunpack.c.l.b16 %v89
    %v183 = vunpack.c.h.b16 %v89
    %v184 = vunpack.c.l.b16 %v90
    %v185 = vunpack.c.h.b16 %v90
    %v186 = vunpack.c.l.b16 %v91
    %v187 = vunpack.c.h.b16 %v91
    %v188 = vunpack.c.l.b16 %v92
    %v189 = vunpack.c.h.b16 %v92
    %v190 = vunpack.c.l.b16 %v93
    %v191 = vunpack.c.h.b16 %v93
    %v192 = vunpack.c.l.b16 %v94
    %v193 = vunpack.c.h.b16 %v94
    %v194 = vunpack.c.l.b16 %v95
    %v195 = vunpack.c.h.b16 %v95
    %v196 = vunpack.c.l.b16 %v96
    %v197 = vunpack.c.h.b16 %v96
    %v198 = vunpack.c.l.b16 %v97
    %v199 = vunpack.c.h.b16 %v97
    %v200 = vpack.c.b16 %v138, %v136
    %v201 = vpack.c.b16 %v139, %v137
    %v202 = vpack.c.b16 %v142, %v140
    %v203 = vpack.c.b16 %v143, %v141
    %v204 = vpack.c.b16 %v146, %v144
    %v205 = vpack.c.b16 %v147, %v145
    %v206 = vpack.c.b16 %v150, %v148
    %v207 = vpack.c.b16 %v151, %v149
    %v208 = vpack.c.b16 %v154, %v152
    %v209 = vpack.c.b16 %v155, %v153
    %v210 = vpack.c.b16 %v158, %v156
    %v211 = vpack.c.b16 %v159, %v157
    %v212 = vpack.c.b16 %v162, %v160
    %v213 = vpack.c.b16 %v163, %v161
    %v214 = vpack.c.b16 %v166, %v164
    %v215 = vpack.c.b16 %v167, %v165
    %v216 = vpack.c.b16 %v170, %v168
    %v217 = vpack.c.b16 %v171, %v169
    %v218 = vpack.c.b16 %v174, %v172
    %v219 = vpack.c.b16 %v175, %v173
    %v220 = vpack.c.b16 %v178, %v176
    %v221 = vpack.c.b16 %v179, %v177
    %v222 = vpack.c.b16 %v182, %v180
    %v223 = vpack.c.b16 %v183, %v181
    %v224 = vpack.c.b16 %v186, %v184
    %v225 = vpack.c.b16 %v187, %v185
    %v226 = vpack.c.b16 %v190, %v188
    %v227 = vpack.c.b16 %v191, %v189
    %v228 = vpack.c.b16 %v194, %v192
    %v229 = vpack.c.b16 %v195, %v193
    %v230 = vpack.c.b16 %v198, %v196
    %v231 = vpack.c.b16 %v199, %v197
    %264 = vmatpush.bf16.msra.mxu0 %v214
    %265 = vmatpush.bf16.msra.mxu0 %v212
    %266 = vmatpush.bf16.msra.mxu0 %v210
    %267 = vmatpush.bf16.msra.mxu0 %v208
    %268 = vmatpush.bf16.msra.mxu0 %v206
    %269 = vmatpush.bf16.msra.mxu0 %v204
    %270 = vmatpush.bf16.msra.mxu0 %v202
    %271 = vmatpush.bf16.msra.mxu0 %v200
    %272 = vmatmul.bf16.gmra.mxu0 %v64
    %v273 = vpop.f32.mrf.mxu0
    %v274 = vadd.f32 %v100, %v273
    %v275 = vpop.f32.mrf.mxu0
    %v276 = vadd.f32 %v100, %v275
    %277 = vdwg.mxu0
    %278 = vmatpush.bf16.msra.mxu0 %v230
    %279 = vmatpush.bf16.msra.mxu0 %v228
    %280 = vmatpush.bf16.msra.mxu0 %v226
    %281 = vmatpush.bf16.msra.mxu0 %v224
    %282 = vmatpush.bf16.msra.mxu0 %v222
    %283 = vmatpush.bf16.msra.mxu0 %v220
    %284 = vmatpush.bf16.msra.mxu0 %v218
    %285 = vmatpush.bf16.msra.mxu0 %v216
    %286 = vmatmul.bf16.gmra.mxu0 %v65
    %v287 = vpop.f32.mrf.mxu0
    %v288 = vadd.f32 %v274, %v287
    %v289 = vpop.f32.mrf.mxu0
    %v290 = vadd.f32 %v276, %v289
    %291 = vdwg.mxu0
    %292 = vmatpush.bf16.msra.mxu0 %v215
    %293 = vmatpush.bf16.msra.mxu0 %v213
    %294 = vmatpush.bf16.msra.mxu0 %v211
    %295 = vmatpush.bf16.msra.mxu0 %v209
    %296 = vmatpush.bf16.msra.mxu0 %v207
    %297 = vmatpush.bf16.msra.mxu0 %v205
    %298 = vmatpush.bf16.msra.mxu0 %v203
    %299 = vmatpush.bf16.msra.mxu0 %v201
    %300 = vmatmul.bf16.gmra.mxu0 %v64
    %v301 = vpop.f32.mrf.mxu0
    %v302 = vadd.f32 %v101, %v301
    %v303 = vpop.f32.mrf.mxu0
    %v304 = vadd.f32 %v101, %v303
    %305 = vdwg.mxu0
    %306 = vmatpush.bf16.msra.mxu0 %v231
    %307 = vmatpush.bf16.msra.mxu0 %v229
    %308 = vmatpush.bf16.msra.mxu0 %v227
    %309 = vmatpush.bf16.msra.mxu0 %v225
    %310 = vmatpush.bf16.msra.mxu0 %v223
    %311 = vmatpush.bf16.msra.mxu0 %v221
    %312 = vmatpush.bf16.msra.mxu0 %v219
    %313 = vmatpush.bf16.msra.mxu0 %v217
    %314 = vmatmul.bf16.gmra.mxu0 %v65
    %v315 = vpop.f32.mrf.mxu0
    %v316 = vadd.f32 %v302, %v315
    %v317 = vpop.f32.mrf.mxu0
    %v318 = vadd.f32 %v304, %v317
    %319 = vdwg.mxu0
    %v320 = vadd.f32 %v288, %v60
    %v321 = vadd.f32 %v316, %v61
    %v322 = vadd.f32 %v290, %v62
    %v323 = vadd.f32 %v318, %v63
    %324 = vst [vmem:[#allocation8] sm:$0xff] %v320
    %325 = vst [vmem:[#allocation8 + $0x8] sm:$0xff] %v321
    %326 = vst [vmem:[#allocation8 + $0x10] sm:$0xff] %v322
    %327 = vst [vmem:[#allocation8 + $0x18] sm:$0xff] %v323
    // Predicated region
    $region26: #{tpu_custom_call.1} parent=1 // pred_check
      _
    $region27: #{tpu_custom_call.1} parent=1 // pred_check_branch
      %329 = sbr.rel (0) target = $region29
    $region28: #{tpu_custom_call.1} parent=1 // pred_region
      %331 = vsyncadd [#allocation4], 0
      %s332 = sshll.u32 [#allocation8], 4
      %s333 = int_to_ptr.vmem [resolvable:$true] %s332
      %s334 = sshll.u32 %s3, 4
      %s335 = int_to_ptr.hbm [resolvable:$true] %s334
      %340 = dma.vmem_to_hbm [thread:$0]  %s333, 512, %s335, [#allocation4], 256, 256, 16
    $region29: #{tpu_custom_call.1} parent=1 // pred_fallthru
      _
    // Predicated region
    $region30: #{tpu_custom_call.1} parent=1 // pred_check
      _
    $region31: #{tpu_custom_call.1} parent=1 // pred_check_branch
      %342 = sbr.rel (0) target = $region33
    $region32: #{tpu_custom_call.1} parent=1 // pred_region
      %344 = dma.done [#allocation4], 512
    $region33: #{tpu_custom_call.1} parent=1 // pred_fallthru
      _
    %345 = vsyncpa [#allocation3], 1
    %346 = vsyncpa [#allocation6], 1
    %347 = vsyncpa [#allocation4], 1

</llo_original>
